<compile_context>
chip_gen: v6e
topology: v6e:2x2x1
jax: 0.10.0
libtpu: 0.0.40
codegen_flags: <defaults>
</compile_context>

<pallas_src>
import functools

import jax
import jax.numpy as jnp
from jax import lax
from jax.experimental import pallas as pl
from jax.experimental.pallas import tpu as pltpu

GAMMA = 2.0
ALPHA = 0.25
BETA = 1.5

LANES = 128
MAX_TILE_ROWS = 4096  # 4096 * 128 * 4B = 2 MiB per input block


def _round_up(x, m):
    return ((x + m - 1) // m) * m


def _ipow(base, gamma):
    """pow with compile-time exponent; small integer gammas become multiplies."""
    gi = int(gamma)
    if float(gi) == float(gamma) and 0 <= gi <= 8:
        r = jnp.ones_like(base)
        for _ in range(gi):
            r = r * base
        return r
    return jnp.power(base, gamma)


def _focal_dice_kernel(x_ref, t_ref, out_ref, *, rem, alpha, gamma,
                       tile_rows, lanes, needs_mask):
    """One grid step: partial lane-wise sums of focal, p*t, p, t for this block."""

    def compute(mask_tail):
        x = x_ref[...].astype(jnp.float32)
        t = t_ref[...].astype(jnp.float32)

        # Shared transcendentals: one exp, one log1p, one approx-recip per element.
        abs_x = jnp.abs(x)
        e = jnp.exp(-abs_x)                               # exp(-|x|)
        lse = jnp.log1p(e)                                # softplus(-|x|)
        r = pl.reciprocal(1.0 + e, approx=True)           # EUP slot, no VALU cleanup
        pos = x >= 0.0
        p = jnp.where(pos, 1.0, e) * r                    # sigmoid(x), stable
        one_m_p = jnp.where(pos, e, 1.0) * r              # 1 - sigmoid(x), no cancel
        log_p = jnp.minimum(x, 0.0) - lse                 # log(sigmoid(x))
        log_1mp = jnp.minimum(-x, 0.0) - lse              # log(1 - sigmoid(x))

        # Binary-target collapse of the focal expression (matches the reference
        # for t in {0,1}; soft labels would take the negative-class branch).
        focal = jnp.where(
            t == 1.0,
            (-alpha) * one_m_p * _ipow(one_m_p, gamma) * log_p,
            (-(1.0 - alpha)) * p * _ipow(p, gamma) * log_1mp,
        )

        if mask_tail:
            # Block-local validity mask (only the last grid block runs this path).
            # rem is a static Python int < tile_rows*lanes, so no int32 overflow.
            flat = (lax.broadcasted_iota(jnp.int32, (tile_rows, lanes), 0) * lanes
                    + lax.broadcasted_iota(jnp.int32, (tile_rows, lanes), 1))
            valid = flat < rem
            zero = jnp.zeros_like(x)
            focal = jnp.where(valid, focal, zero)
            p = jnp.where(valid, p, zero)
            t = jnp.where(valid, t, zero)

        # Lane-wise partial sums; rows stored directly (no concat, no zero rows).
        out_ref[0, 0:1, :] = jnp.sum(focal, axis=0, keepdims=True)   # sum(focal)
        out_ref[0, 1:2, :] = jnp.sum(p * t, axis=0, keepdims=True)   # sum(p * t)
        out_ref[0, 2:3, :] = jnp.sum(p, axis=0, keepdims=True)       # sum(p)
        out_ref[0, 3:4, :] = jnp.sum(t, axis=0, keepdims=True)       # sum(t)

    if not needs_mask:
        # n fills every block exactly: no mask work anywhere.
        compute(mask_tail=False)
    else:
        i = pl.program_id(0)
        last = pl.num_programs(0) - 1

        @pl.when(i != last)
        def _():
            compute(mask_tail=False)

        @pl.when(i == last)
        def _():
            compute(mask_tail=True)


def combined_focal_dice_loss(output, target, gamma=GAMMA, alpha=ALPHA,
                             beta=BETA):
    """Fused focal + dice + FP-penalty loss.

    `output` (logits) and `target` may be any float/int/bool dtype; they are
    cast inside the kernel, so pass bf16 / int8 / bool natively (no wrapper
    astype -- that would be another full HBM pass).
    """
    x = output.reshape(-1)
    t = target.reshape(-1)
    n = x.shape[0]

    # Pad only to a lane multiple (<=127 elements); skipped when n % 128 == 0.
    pad = (-n) % LANES
    if pad:
        x = jnp.pad(x, (0, pad))
        t = jnp.pad(t, (0, pad))
    rows = (n + pad) // LANES

    # Tile selection: big blocks to amortize the ~0.35 us per-step overhead, but
    # >=2 grid steps for moderate n so v7x's two TensorCores both get work.
    if rows <= 8:
        tile_rows = rows
    else:
        tile_rows = min(MAX_TILE_ROWS, _round_up(pl.cdiv(rows, 2), 8))
    num_blocks = pl.cdiv(rows, tile_rows)

    x2 = x.reshape(rows, LANES)
    t2 = t.reshape(rows, LANES)

    # Number of valid elements inside the last grid block (static Python int).
    rem = n - (num_blocks - 1) * tile_rows * LANES
    needs_mask = rem != tile_rows * LANES

    in_bytes = x2.size * x2.dtype.itemsize + t2.size * t2.dtype.itemsize
    out_bytes = num_blocks * 4 * LANES * 4

    partials = pl.pallas_call(
        functools.partial(_focal_dice_kernel, rem=int(rem), alpha=float(alpha),
                          gamma=float(gamma), tile_rows=tile_rows, lanes=LANES,
                          needs_mask=bool(needs_mask)),
        out_shape=jax.ShapeDtypeStruct((num_blocks, 4, LANES), jnp.float32),
        grid_spec=pltpu.PrefetchScalarGridSpec(
            num_scalar_prefetch=0,
            grid=(num_blocks,),
            in_specs=[
                pl.BlockSpec((tile_rows, LANES), lambda i: (i, 0)),
                pl.BlockSpec((tile_rows, LANES), lambda i: (i, 0)),
            ],
            out_specs=pl.BlockSpec((1, 4, LANES), lambda i: (i, 0, 0)),
        ),
        compiler_params=pltpu.CompilerParams(
            dimension_semantics=("parallel",),
        ),
        cost_estimate=pl.CostEstimate(
            flops=int(22 * rows * LANES),
            transcendentals=int(3 * rows * LANES),
            bytes_accessed=int(in_bytes + out_bytes),
        ),
    )(x2, t2)

    sums = jnp.sum(partials, axis=(0, 2))   # (4,)
    sum_focal, sum_pt, sum_p, sum_t = sums[0], sums[1], sums[2], sums[3]

    focal_mean = sum_focal / n
    dice_loss = 1.0 - (2.0 * sum_pt + 1.0) / (sum_p + sum_t + 1.0)
    fp_penalty = beta * (sum_p - sum_pt)     # sum((1 - t) * p) == sum(p) - sum(p*t)
    return focal_mean + dice_loss + fp_penalty


def _reference(output, target, gamma=GAMMA, alpha=ALPHA, beta=BETA):
    prob = jax.nn.sigmoid(output.astype(jnp.float32))
    t = target.astype(jnp.float32)
    fw = jnp.where(t == 1.0, alpha * (1.0 - prob), (1.0 - alpha) * prob)
    focal = (-fw * (1.0 - prob) ** gamma * t * jnp.log(prob)
             - fw * prob ** gamma * (1.0 - t) * jnp.log(1.0 - prob))
    intersection = jnp.sum(prob * t)
    dice = 1.0 - (2.0 * intersection + 1.0) / (jnp.sum(prob) + jnp.sum(t) + 1.0)
    fp = beta * jnp.sum((1.0 - t) * prob)
    return jnp.mean(focal) + dice + fp


if __name__ == "__main__":
    key = jax.random.PRNGKey(0)
    k1, k2 = jax.random.split(key)
    # Segmentation-style inputs: logits NCHW (2, 4, 16, 16), binary target.
    logits = jax.random.normal(k1, (2, 4, 16, 16), dtype=jnp.float32) * 2.0
    target = jax.random.bernoulli(k2, 0.3, (2, 4, 16, 16)).astype(jnp.float32)

    loss = jax.block_until_ready(combined_focal_dice_loss(logits, target))
    ref = jax.block_until_ready(_reference(logits, target))
    # rtol slightly loosened vs exact f32 because of pl.reciprocal(approx=True).
    assert jnp.allclose(loss, ref, rtol=5e-3, atol=1e-3), (loss, ref)
    print("KERNEL_OK")
</pallas_src>

<mosaic_0001>
module attributes {stable_mosaic.version = 11 : i64} {
  func.func @_focal_dice_kernel(%arg0: i32, %arg1: memref<8x128xf32, #tpu.memory_space<vmem>>, %arg2: memref<8x128xf32, #tpu.memory_space<vmem>>, %arg3: memref<1x4x128xf32, #tpu.memory_space<vmem>>) attributes {dimension_semantics = [#tpu.dimension_semantics<parallel>], iteration_bounds = array<i64: 2>, scalar_prefetch = 0 : i64, scratch_operands = 0 : i64, tpu.core_type = #tpu.core_type<tc>, window_params = [{transform_indices = @transform_0, window_bounds = array<i64: 8, 128>}, {transform_indices = @transform_1, window_bounds = array<i64: 8, 128>}, {transform_indices = @transform_2, window_bounds = array<i64: 1, 4, 128>}]} {
    %c0 = arith.constant 0 : index
    %c0_0 = arith.constant 0 : index
    %0 = vector.load %arg1[%c0, %c0_0] : memref<8x128xf32, #tpu.memory_space<vmem>>, vector<8x128xf32>
    %c0_1 = arith.constant 0 : index
    %c0_2 = arith.constant 0 : index
    %1 = vector.load %arg2[%c0_1, %c0_2] : memref<8x128xf32, #tpu.memory_space<vmem>>, vector<8x128xf32>
    %2 = math.absf %0 : vector<8x128xf32>
    %cst = arith.constant 0.000000e+00 : f32
    %3 = vector.broadcast %cst : f32 to vector<8x128xf32>
    %4 = arith.subf %3, %2 : vector<8x128xf32>
    %5 = math.exp %4 : vector<8x128xf32>
    %6 = math.log1p %5 : vector<8x128xf32>
    %cst_3 = arith.constant 1.000000e+00 : f32
    %7 = vector.broadcast %cst_3 : f32 to vector<8x128xf32>
    %8 = arith.addf %7, %5 : vector<8x128xf32>
    %9 = tpu.reciprocal %8 {approx = true} : vector<8x128xf32> -> vector<8x128xf32>
    %cst_4 = arith.constant 0.000000e+00 : f32
    %10 = vector.broadcast %cst_4 : f32 to vector<8x128xf32>
    %11 = arith.cmpf oge, %0, %10 : vector<8x128xf32>
    %cst_5 = arith.constant 1.000000e+00 : f32
    %12 = vector.broadcast %cst_5 : f32 to vector<8x128xf32>
    %13 = arith.select %11, %12, %5 : vector<8x128xi1>, vector<8x128xf32>
    %14 = arith.mulf %13, %9 : vector<8x128xf32>
    %cst_6 = arith.constant 1.000000e+00 : f32
    %15 = vector.broadcast %cst_6 : f32 to vector<8x128xf32>
    %16 = arith.select %11, %5, %15 : vector<8x128xi1>, vector<8x128xf32>
    %17 = arith.mulf %16, %9 : vector<8x128xf32>
    %cst_7 = arith.constant 0.000000e+00 : f32
    %18 = vector.broadcast %cst_7 : f32 to vector<8x128xf32>
    %19 = arith.minimumf %0, %18 : vector<8x128xf32>
    %20 = arith.subf %19, %6 : vector<8x128xf32>
    %cst_8 = arith.constant 0.000000e+00 : f32
    %21 = vector.broadcast %cst_8 : f32 to vector<8x128xf32>
    %22 = arith.subf %21, %0 : vector<8x128xf32>
    %cst_9 = arith.constant 0.000000e+00 : f32
    %23 = vector.broadcast %cst_9 : f32 to vector<8x128xf32>
    %24 = arith.minimumf %22, %23 : vector<8x128xf32>
    %25 = arith.subf %24, %6 : vector<8x128xf32>
    %cst_10 = arith.constant 1.000000e+00 : f32
    %26 = vector.broadcast %cst_10 : f32 to vector<8x128xf32>
    %27 = arith.cmpf oeq, %1, %26 : vector<8x128xf32>
    %cst_11 = arith.constant -2.500000e-01 : f32
    %28 = vector.broadcast %cst_11 : f32 to vector<8x128xf32>
    %29 = arith.mulf %28, %17 : vector<8x128xf32>
    %cst_12 = arith.constant 1.000000e+00 : f32
    %30 = vector.broadcast %cst_12 : f32 to vector<8x128xf32>
    %31 = arith.mulf %30, %17 : vector<8x128xf32>
    %32 = arith.mulf %31, %17 : vector<8x128xf32>
    %33 = arith.mulf %29, %32 : vector<8x128xf32>
    %34 = arith.mulf %33, %20 : vector<8x128xf32>
    %cst_13 = arith.constant -7.500000e-01 : f32
    %35 = vector.broadcast %cst_13 : f32 to vector<8x128xf32>
    %36 = arith.mulf %35, %14 : vector<8x128xf32>
    %cst_14 = arith.constant 1.000000e+00 : f32
    %37 = vector.broadcast %cst_14 : f32 to vector<8x128xf32>
    %38 = arith.mulf %37, %14 : vector<8x128xf32>
    %39 = arith.mulf %38, %14 : vector<8x128xf32>
    %40 = arith.mulf %36, %39 : vector<8x128xf32>
    %41 = arith.mulf %40, %25 : vector<8x128xf32>
    %42 = arith.select %27, %34, %41 : vector<8x128xi1>, vector<8x128xf32>
    %cst_15 = arith.constant dense<0.000000e+00> : vector<128xf32>
    %43 = vector.multi_reduction <add>, %42, %cst_15 [0] : vector<8x128xf32> to vector<128xf32>
    %44 = vector.shape_cast %43 : vector<128xf32> to vector<1x128xf32>
    %c0_16 = arith.constant 0 : index
    %c0_17 = arith.constant 0 : index
    %c0_18 = arith.constant 0 : index
    %45 = vector.load %arg3[%c0_16, %c0_17, %c0_18] : memref<1x4x128xf32, #tpu.memory_space<vmem>>, vector<1x1x128xf32>
    %46 = vector.shape_cast %45 : vector<1x1x128xf32> to vector<1x128xf32>
    %47 = vector.shape_cast %44 : vector<1x128xf32> to vector<1x1x128xf32>
    tpu.vector_store %arg3[%c0_16, %c0_17, %c0_18], %47 {strides = array<i32>} : memref<1x4x128xf32, #tpu.memory_space<vmem>>, vector<1x1x128xf32>,
    %48 = arith.mulf %14, %1 : vector<8x128xf32>
    %cst_19 = arith.constant dense<0.000000e+00> : vector<128xf32>
    %49 = vector.multi_reduction <add>, %48, %cst_19 [0] : vector<8x128xf32> to vector<128xf32>
    %50 = vector.shape_cast %49 : vector<128xf32> to vector<1x128xf32>
    %c0_20 = arith.constant 0 : index
    %c1 = arith.constant 1 : index
    %c0_21 = arith.constant 0 : index
    %51 = vector.load %arg3[%c0_20, %c1, %c0_21] : memref<1x4x128xf32, #tpu.memory_space<vmem>>, vector<1x1x128xf32>
    %52 = vector.shape_cast %51 : vector<1x1x128xf32> to vector<1x128xf32>
    %53 = vector.shape_cast %50 : vector<1x128xf32> to vector<1x1x128xf32>
    tpu.vector_store %arg3[%c0_20, %c1, %c0_21], %53 {strides = array<i32>} : memref<1x4x128xf32, #tpu.memory_space<vmem>>, vector<1x1x128xf32>,
    %cst_22 = arith.constant dense<0.000000e+00> : vector<128xf32>
    %54 = vector.multi_reduction <add>, %14, %cst_22 [0] : vector<8x128xf32> to vector<128xf32>
    %55 = vector.shape_cast %54 : vector<128xf32> to vector<1x128xf32>
    %c0_23 = arith.constant 0 : index
    %c2 = arith.constant 2 : index
    %c0_24 = arith.constant 0 : index
    %56 = vector.load %arg3[%c0_23, %c2, %c0_24] : memref<1x4x128xf32, #tpu.memory_space<vmem>>, vector<1x1x128xf32>
    %57 = vector.shape_cast %56 : vector<1x1x128xf32> to vector<1x128xf32>
    %58 = vector.shape_cast %55 : vector<1x128xf32> to vector<1x1x128xf32>
    tpu.vector_store %arg3[%c0_23, %c2, %c0_24], %58 {strides = array<i32>} : memref<1x4x128xf32, #tpu.memory_space<vmem>>, vector<1x1x128xf32>,
    %cst_25 = arith.constant dense<0.000000e+00> : vector<128xf32>
    %59 = vector.multi_reduction <add>, %1, %cst_25 [0] : vector<8x128xf32> to vector<128xf32>
    %60 = vector.shape_cast %59 : vector<128xf32> to vector<1x128xf32>
    %c0_26 = arith.constant 0 : index
    %c3 = arith.constant 3 : index
    %c0_27 = arith.constant 0 : index
    %61 = vector.load %arg3[%c0_26, %c3, %c0_27] : memref<1x4x128xf32, #tpu.memory_space<vmem>>, vector<1x1x128xf32>
    %62 = vector.shape_cast %61 : vector<1x1x128xf32> to vector<1x128xf32>
    %63 = vector.shape_cast %60 : vector<1x128xf32> to vector<1x1x128xf32>
    tpu.vector_store %arg3[%c0_26, %c3, %c0_27], %63 {strides = array<i32>} : memref<1x4x128xf32, #tpu.memory_space<vmem>>, vector<1x1x128xf32>,
    return
  }
  func.func @transform_0(%arg0: i32) -> (i32, i32) {
    %c0_i32 = arith.constant 0 : i32
    %c0_i32_0 = arith.constant 0 : i32
    return %arg0, %c0_i32 : i32, i32
  }
  func.func @transform_1(%arg0: i32) -> (i32, i32) {
    %c0_i32 = arith.constant 0 : i32
    %c0_i32_0 = arith.constant 0 : i32
    return %arg0, %c0_i32 : i32, i32
  }
  func.func @transform_2(%arg0: i32) -> (i32, i32, i32) {
    %c0_i32 = arith.constant 0 : i32
    %c0_i32_0 = arith.constant 0 : i32
    %c0_i32_1 = arith.constant 0 : i32
    return %arg0, %c0_i32, %c0_i32_0 : i32, i32, i32
  }
}

</mosaic_0001>

<llo_original>
// kernel: tpu_custom_call.1
$region0: #{tpu_custom_call.1}
  #allocation0 [shape = 'u32[]', space=smem, size = 0x4, offset = 0x4, fixed_abs, tag = 'smem constant byte address 0x4 - core index']
  #allocation1 [shape = 'u32[144,128]{1,0:T(1,128)}', space=vmem, size = 0x12000, scoped, tag = 'internal scratch']
  %s0 = inlined_call_operand.hbm [shape: f32[16,128], index: 0, kind: input, shape index: {}]
  %s1 = inlined_call_operand.hbm [shape: f32[16,128], index: 1, kind: input, shape index: {}]
  %s2 = inlined_call_operand.hbm [shape: f32[2,4,128], index: 2, kind: output, shape index: {}]
  %s3 = sld [smem:[#allocation0]]
  $region49: #{tpu_custom_call.1} parent=0
    _
  %s5 = ssub.s32 1, %s3
  %s6 = scalar_select 0, %s5, %s3
  $region1: #{tpu_custom_call.1} parent=0
    #allocation2 [shape = 'u8[8192]{0}', space=vmem, size = 0x2000, scoped, tag = 'input window, operand 0']
    #allocation3 [shape = 's32[2]{0}', space=sflag, size = 0x8, scoped, tag = 'scoped memory for tpu_custom_call.1']
    #allocation4 [shape = 's32[2]{0}', space=sflag, size = 0x8, scoped, tag = 'scoped memory for tpu_custom_call.1']
    #allocation5 [shape = 'u8[8192]{0}', space=vmem, size = 0x2000, scoped, tag = 'input window, operand 1']
    #allocation6 [shape = 's32[2]{0}', space=sflag, size = 0x8, scoped, tag = 'scoped memory for tpu_custom_call.1']
    #allocation7 [shape = 'u8[4096]{0}', space=vmem, size = 0x1000, scoped, tag = 'output window, operand 0']
    %7 = vsyncpa [#allocation3], 0
    %s8 = scalar_lea.sflag [#allocation3], 1
    %9 = vsyncpa %s8, 0
    %10 = vsyncpa [#allocation6], 0
    %s11 = scalar_lea.sflag [#allocation6], 1
    %12 = vsyncpa %s11, 0
    %13 = vsyncpa [#allocation4], 0
    %s14 = scalar_lea.sflag [#allocation4], 1
    %15 = vsyncpa %s14, 0
    loop: start=0, step=1, limit=4
    $region2: #{tpu_custom_call.1} parent=1 // loop_pre_header
      _
    $region3: #{tpu_custom_call.1} parent=1 // loop_header
      %s17 = sphi 0, %s21
      %p18 = scmp.ge.s32.totalorder %s17, 4
      %s27 = sphi 0, %s29
      %s30 = sphi 0, %s27
      %s31 = sphi 0, %s30
      %s47 = sphi 0, %s31
      %s53 = sphi 0, %s55
      %s56 = sphi 0, %s53
      %s57 = sphi 0, %s56
      %s73 = sphi 0, %s57
      %s79 = sphi 0, %s81
      %s82 = sphi 0, %s79
      %s83 = sphi 0, %s82
      %s99 = sphi 0, %s83
    $region4: #{tpu_custom_call.1} parent=1 // loop_header_branch
      %20 = sbr.rel (%p18) target = $region8
    $region5: #{tpu_custom_call.1} parent=1 // loop_body
      %s22 = ssub.s32 %s17, 1
      %s23 = ssub.s32 %s17, 2
      %s24 = sadd.s32 %s17, 1
      %s25 = ssub.s32 %s17, %s24
      %p26 = scmp.eq.s32.totalorder %s25, 0
      %s28 = sadd.s32 %s27, 1
      %s29 = scalar_select %p26, %s27, %s28
      %p32 = pneg %p26
      %p33 = scmp.eq.s32.totalorder %s17, 1
      %p34 = por %p32, %p33
      %p35 = scmp.ne.s32.totalorder %s27, %s30
      %p36 = scmp.eq.s32.totalorder %s17, 0
      %p37 = por %p35, %p36
      %p38 = scmp.ne.s32.totalorder %s27, %s30
      %p39 = scmp.eq.s32.totalorder %s22, 1
      %p40 = por %p38, %p39
      %p41 = scmp.ne.s32.totalorder %s30, %s31
      %p42 = scmp.eq.s32.totalorder %s22, 0
      %p43 = por %p41, %p42
      %p44 = scmp.ne.s32.totalorder %s30, %s31
      %p45 = scmp.eq.s32.totalorder %s23, 1
      %p46 = por %p44, %p45
      %p48 = scmp.ne.s32.totalorder %s31, %s47
      %p49 = scmp.eq.s32.totalorder %s23, 0
      %p50 = por %p48, %p49
      %s51 = ssub.s32 %s17, %s24
      %p52 = scmp.eq.s32.totalorder %s51, 0
      %s54 = sadd.s32 %s53, 1
      %s55 = scalar_select %p52, %s53, %s54
      %p58 = pneg %p52
      %p59 = scmp.eq.s32.totalorder %s17, 1
      %p60 = por %p58, %p59
      %p61 = scmp.ne.s32.totalorder %s53, %s56
      %p62 = scmp.eq.s32.totalorder %s17, 0
      %p63 = por %p61, %p62
      %p64 = scmp.ne.s32.totalorder %s53, %s56
      %p65 = scmp.eq.s32.totalorder %s22, 1
      %p66 = por %p64, %p65
      %p67 = scmp.ne.s32.totalorder %s56, %s57
      %p68 = scmp.eq.s32.totalorder %s22, 0
      %p69 = por %p67, %p68
      %p70 = scmp.ne.s32.totalorder %s56, %s57
      %p71 = scmp.eq.s32.totalorder %s23, 1
      %p72 = por %p70, %p71
      %p74 = scmp.ne.s32.totalorder %s57, %s73
      %p75 = scmp.eq.s32.totalorder %s23, 0
      %p76 = por %p74, %p75
      %s77 = ssub.s32 %s17, %s24
      %p78 = scmp.eq.s32.totalorder %s77, 0
      %s80 = sadd.s32 %s79, 1
      %s81 = scalar_select %p78, %s79, %s80
      %p84 = pneg %p78
      %p85 = scmp.eq.s32.totalorder %s17, 1
      %p86 = por %p84, %p85
      %p87 = scmp.ne.s32.totalorder %s79, %s82
      %p88 = scmp.eq.s32.totalorder %s17, 0
      %p89 = por %p87, %p88
      %p90 = scmp.ne.s32.totalorder %s79, %s82
      %p91 = scmp.eq.s32.totalorder %s22, 1
      %p92 = por %p90, %p91
      %p93 = scmp.ne.s32.totalorder %s82, %s83
      %p94 = scmp.eq.s32.totalorder %s22, 0
      %p95 = por %p93, %p94
      %p96 = scmp.ne.s32.totalorder %s82, %s83
      %p97 = scmp.eq.s32.totalorder %s23, 1
      %p98 = por %p96, %p97
      %p100 = scmp.ne.s32.totalorder %s83, %s99
      %p101 = scmp.eq.s32.totalorder %s23, 0
      %p102 = por %p100, %p101
      %p103 = scmp.le.s32.totalorder 1, %s17
      %p104 = scmp.lt.s32.totalorder %s17, 3
      %p105 = pnand %p103, %p104
      %p106 = pneg %p105
      // Predicated region
      $region9: #{tpu_custom_call.1} parent=5 // pred_check
        _
      $region10: #{tpu_custom_call.1} parent=5 // pred_check_branch
        %108 = sbr.rel (%p105) target = $region12
      $region11: #{tpu_custom_call.1} parent=5 // pred_region
        %s109 = ssub.s32 %s17, 1
      $region12: #{tpu_custom_call.1} parent=5 // pred_fallthru
        _
      %p110 = scmp.lt.s32.totalorder %s17, 2
      // Predicated region
      $region13: #{tpu_custom_call.1} parent=5 // pred_check
        %p111 = pneg %p110
      $region14: #{tpu_custom_call.1} parent=5 // pred_check_branch
        %113 = sbr.rel (%p111) target = $region16
      $region15: #{tpu_custom_call.1} parent=5 // pred_region
        // Predicated region
        $region17: #{tpu_custom_call.1} parent=15 // pred_check
          %p114 = pneg %p37
        $region18: #{tpu_custom_call.1} parent=15 // pred_check_branch
          %116 = sbr.rel (%p114) target = $region20
        $region19: #{tpu_custom_call.1} parent=15 // pred_region
          %s117 = sand.u32 %s27, 1
          %s118 = scalar_lea.sflag [#allocation3], %s117
          %s119 = sand.u32 %s27, 1
          %s120 = smul.addr %s119, 8
          %s121 = scalar_lea.vmem [#allocation2], %s120
          %s123 = ssub.s32 128, 128
          %124 = vsyncadd %s118, %s123
          %s125 = smul.addr %s17, 128
          %s126 = scalar_lea.hbm %s0, %s125
          %s128 = sshll.u32 %s121, 4
          %s129 = int_to_ptr.vmem [resolvable:$true] %s128
          %131 = dma.hbm_to_vmem [thread:$0]  %s126, 128, %s129, %s118
        $region20: #{tpu_custom_call.1} parent=15 // pred_fallthru
          _
        // Predicated region
        $region21: #{tpu_custom_call.1} parent=15 // pred_check
          %p132 = pneg %p63
        $region22: #{tpu_custom_call.1} parent=15 // pred_check_branch
          %134 = sbr.rel (%p132) target = $region24
        $region23: #{tpu_custom_call.1} parent=15 // pred_region
          %s135 = sand.u32 %s53, 1
          %s136 = scalar_lea.sflag [#allocation6], %s135
          %s137 = sand.u32 %s53, 1
          %s138 = smul.addr %s137, 8
          %s139 = scalar_lea.vmem [#allocation5], %s138
          %s141 = ssub.s32 128, 128
          %142 = vsyncadd %s136, %s141
          %s143 = smul.addr %s17, 128
          %s144 = scalar_lea.hbm %s1, %s143
          %s146 = sshll.u32 %s139, 4
          %s147 = int_to_ptr.vmem [resolvable:$true] %s146
          %149 = dma.hbm_to_vmem [thread:$0]  %s144, 128, %s147, %s136
        $region24: #{tpu_custom_call.1} parent=15 // pred_fallthru
          _
      $region16: #{tpu_custom_call.1} parent=5 // pred_fallthru
        _
      %p150 = scmp.le.s32.totalorder 1, %s17
      %p151 = scmp.lt.s32.totalorder %s17, 3
      %p152 = pnand %p150, %p151
      %p153 = pneg %p152
      // Predicated region
      $region25: #{tpu_custom_call.1} parent=5 // pred_check
        _
      $region26: #{tpu_custom_call.1} parent=5 // pred_check_branch
        %155 = sbr.rel (%p152) target = $region28
      $region27: #{tpu_custom_call.1} parent=5 // pred_region
        %s156 = ssub.s32 %s17, 1
        %s157 = sand.u32 %s30, 1
        %s158 = scalar_lea.sflag [#allocation3], %s157
        %s159 = sand.u32 %s30, 1
        %s160 = smul.addr %s159, 8
        %s161 = scalar_lea.vmem [#allocation2], %s160
        // Predicated region
        $region29: #{tpu_custom_call.1} parent=27 // pred_check
          %p162 = pneg %p43
        $region30: #{tpu_custom_call.1} parent=27 // pred_check_branch
          %164 = sbr.rel (%p162) target = $region32
        $region31: #{tpu_custom_call.1} parent=27 // pred_region
          %165 = dma.done %s158, 128
        $region32: #{tpu_custom_call.1} parent=27 // pred_fallthru
          _
        %s166 = sand.u32 %s56, 1
        %s167 = scalar_lea.sflag [#allocation6], %s166
        %s168 = sand.u32 %s56, 1
        %s169 = smul.addr %s168, 8
        %s170 = scalar_lea.vmem [#allocation5], %s169
        // Predicated region
        $region33: #{tpu_custom_call.1} parent=27 // pred_check
          %p171 = pneg %p69
        $region34: #{tpu_custom_call.1} parent=27 // pred_check_branch
          %173 = sbr.rel (%p171) target = $region36
        $region35: #{tpu_custom_call.1} parent=27 // pred_region
          %174 = dma.done %s167, 128
        $region36: #{tpu_custom_call.1} parent=27 // pred_fallthru
          _
        %s175 = sand.u32 %s30, 1
        %s176 = scalar_lea.sflag [#allocation3], %s175
        %s177 = sand.u32 %s30, 1
        %s178 = smul.addr %s177, 8
        %s179 = scalar_lea.vmem [#allocation2], %s178
        %p180 = pneg %p43
        %p181 = pneg %p40
        %s182 = sand.u32 %s56, 1
        %s183 = scalar_lea.sflag [#allocation6], %s182
        %s184 = sand.u32 %s56, 1
        %s185 = smul.addr %s184, 8
        %s186 = scalar_lea.vmem [#allocation5], %s185
        %p187 = pneg %p69
        %p188 = pneg %p66
        %p189 = pneg %p95
        %p190 = pneg %p92
        %s191 = sand.u32 %s82, 1
        %s192 = scalar_lea.sflag [#allocation4], %s191
        %s193 = sand.u32 %s82, 1
        %s194 = smul.addr %s193, 4
        %s195 = scalar_lea.vmem [#allocation7], %s194
        %v196 = vld [vmem:[%s161] sm:$0xff]
        %v197 = vld [vmem:[%s170] sm:$0xff]
        %v198 = vand.u32 2147483647, %v196
        %v199 = vsub.f32 0.0, %v198
        %v200 = vmul.f32 %v199, 1.442695
        %v201 = vpow.pop %v200
        %v202 = vadd.f32 %v201, 1.0
        %v203 = vlog2.pop %v202
        %v204 = vmul.f32 %v203, 0.6931472
        %v205 = vmul.f32 -0.5, %v201
        %v206 = vadd.f32 %v205, 1.0
        %v207 = vmul.f32 %v206, %v201
        %v208 = vand.u32 2147483647, %v201
        %vm209 = vcmp.lt.f32.partialorder %v208, 0.0004427343
        %v210 = vsel %vm209, %v207, %v204
        %v211 = vadd.f32 %v201, 1.0
        %v212 = vrcp.pop %v211
        %vm213 = vcmp.ge.f32.partialorder %v196, 0.0
        %v214 = vsel %vm213, 1.0, %v201
        %v215 = vmul.f32 %v214, %v212
        %v216 = vsel %vm213, %v201, 1.0
        %v217 = vmul.f32 %v216, %v212
        %v218 = vmin.f32 %v196, 0.0
        %v219 = vsub.f32 %v218, %v210
        %v220 = vsub.f32 0.0, %v196
        %v221 = vmin.f32 %v220, 0.0
        %v222 = vsub.f32 %v221, %v210
        %vm223 = vcmp.eq.f32.partialorder %v197, 1.0
        %v224 = vmul.f32 %v217, -0.25
        %v225 = vmul.f32 %v217, %v217
        %v226 = vmul.f32 %v224, %v225
        %v227 = vmul.f32 %v226, %v219
        %v228 = vmul.f32 %v215, -0.75
        %v229 = vmul.f32 %v215, %v215
        %v230 = vmul.f32 %v228, %v229
        %v231 = vmul.f32 %v230, %v222
        %v232 = vsel %vm223, %v227, %v231
        %v233 = vrot.slane %v232, 4
        %v234 = vadd.f32 %v232, %v233
        %v235 = vrot.slane %v234, 2
        %v236 = vadd.f32 %v234, %v235
        %v237 = vrot.slane %v236, 1
        %v238 = vadd.f32 %v236, %v237
        %239 = vst [vmem:[%s195] sm:$0x1] %v238
        %v240 = vmul.f32 %v215, %v197
        %v241 = vrot.slane %v240, 4
        %v242 = vadd.f32 %v240, %v241
        %v243 = vrot.slane %v242, 2
        %v244 = vadd.f32 %v242, %v243
        %v245 = vrot.slane %v244, 1
        %v246 = vadd.f32 %v244, %v245
        %247 = vst [vmem:[%s195 + $0x1] sm:$0x1] %v246
        %v248 = vrot.slane %v215, 4
        %v249 = vadd.f32 %v215, %v248
        %v250 = vrot.slane %v249, 2
        %v251 = vadd.f32 %v249, %v250
        %v252 = vrot.slane %v251, 1
        %v253 = vadd.f32 %v251, %v252
        %254 = vst [vmem:[%s195 + $0x2] sm:$0x1] %v253
        %v255 = vrot.slane %v197, 4
        %v256 = vadd.f32 %v197, %v255
        %v257 = vrot.slane %v256, 2
        %v258 = vadd.f32 %v256, %v257
        %v259 = vrot.slane %v258, 1
        %v260 = vadd.f32 %v258, %v259
        %261 = vst [vmem:[%s195 + $0x3] sm:$0x1] %v260
        %s262 = sand.u32 %s82, 1
        %s263 = scalar_lea.sflag [#allocation4], %s262
        %s264 = sand.u32 %s82, 1
        %s265 = smul.addr %s264, 4
        %s266 = scalar_lea.vmem [#allocation7], %s265
        // Predicated region
        $region37: #{tpu_custom_call.1} parent=27 // pred_check
          %p267 = pneg %p92
        $region38: #{tpu_custom_call.1} parent=27 // pred_check_branch
          %269 = sbr.rel (%p267) target = $region40
        $region39: #{tpu_custom_call.1} parent=27 // pred_region
          %s271 = ssub.s32 64, 64
          %272 = vsyncadd %s263, %s271
          %s273 = smul.addr %s22, 64
          %s274 = scalar_lea.hbm %s2, %s273
          %s276 = sshll.u32 %s266, 4
          %s277 = int_to_ptr.vmem [resolvable:$true] %s276
          %279 = dma.vmem_to_hbm [thread:$0]  %s277, 64, %s274, %s263
        $region40: #{tpu_custom_call.1} parent=27 // pred_fallthru
          _
      $region28: #{tpu_custom_call.1} parent=5 // pred_fallthru
        _
      %p280 = scmp.le.s32.totalorder 2, %s17
      // Predicated region
      $region41: #{tpu_custom_call.1} parent=5 // pred_check
        %p281 = pneg %p280
      $region42: #{tpu_custom_call.1} parent=5 // pred_check_branch
        %283 = sbr.rel (%p281) target = $region44
      $region43: #{tpu_custom_call.1} parent=5 // pred_region
        %s284 = ssub.s32 %s17, 2
        // Predicated region
        $region45: #{tpu_custom_call.1} parent=43 // pred_check
          %p285 = pneg %p98
        $region46: #{tpu_custom_call.1} parent=43 // pred_check_branch
          %287 = sbr.rel (%p285) target = $region48
        $region47: #{tpu_custom_call.1} parent=43 // pred_region
          %s288 = sand.u32 %s83, 1
          %s289 = scalar_lea.sflag [#allocation4], %s288
          %s290 = sand.u32 %s83, 1
          %s291 = smul.addr %s290, 4
          %s292 = scalar_lea.vmem [#allocation7], %s291
          %293 = dma.done %s289, 64
        $region48: #{tpu_custom_call.1} parent=43 // pred_fallthru
          _
      $region44: #{tpu_custom_call.1} parent=5 // pred_fallthru
        _
    $region6: #{tpu_custom_call.1} parent=1 // loop_footer
      %s21 = sadd.s32 1, %s17
    $region7: #{tpu_custom_call.1} parent=1 // loop_footer_branch
      %16 = sbr.rel target = $region3
    $region8: #{tpu_custom_call.1} parent=1 // loop_exit
      _
    %294 = vsyncpa [#allocation3], 1
    %s295 = scalar_lea.sflag [#allocation3], 1
    %296 = vsyncpa %s295, 1
    %297 = vsyncpa [#allocation6], 1
    %s298 = scalar_lea.sflag [#allocation6], 1
    %299 = vsyncpa %s298, 1
    %300 = vsyncpa [#allocation4], 1
    %s301 = scalar_lea.sflag [#allocation4], 1
    %302 = vsyncpa %s301, 1

</llo_original>
